<compile_context>
chip_gen: v5e
topology: v5e:2x2
jax: 0.10.0
libtpu: 0.0.40
codegen_flags: <defaults>
</compile_context>

<pallas_src>
import math

import jax
import jax.numpy as jnp
from jax.experimental import pallas as pl
from jax.experimental.pallas import tpu as pltpu


def _round_up(x, m):
    return ((x + m - 1) // m) * m


def note_tau_kernel(tt_ref, wexp_ref, bwide_ref, wblk_ref, out_ref):
    # tt_ref:    (R, f)       f folded scalar times per row
    # wexp_ref:  (f, f*H)     block j of width H holds w1 (broadcast-as-matmul)
    # bwide_ref: (1, f*H)     b1 tiled f times
    # wblk_ref:  (f*H, f*E)   block-diagonal second linear (w2 per block)
    # out_ref:   (R, f*E)     lane-dense (f*E is a multiple of 128)
    pre = jnp.dot(tt_ref[...], wexp_ref[...], preferred_element_type=jnp.float32)
    h = jnp.tanh(pre + bwide_ref[...])                           # VPU + EUP, lane-dense
    out_ref[...] = jnp.dot(h, wblk_ref[...],
                           preferred_element_type=jnp.float32).astype(out_ref.dtype)


def note_tau_encoder_forward(tt, w_lin, b_lin, w_out, *, block_rows=2048):
    """Pallas forward of Note_Tau_Encoder.

    tt:    (B, N) or (B, N, 1)
    w_lin: (H, 1)    Linear(1, H).weight
    b_lin: (H,)      Linear(1, H).bias
    w_out: (E, H)    Linear(H, E, bias=False).weight
    returns: (B, N, E) float32
    """
    if tt.ndim == 3:                       # module's dim()==3 branch: 'b n 1' already
        tt = tt[..., 0]
    B, N = tt.shape
    H = w_lin.shape[0]
    E = w_out.shape[0]

    total = B * N
    f = 128 // math.gcd(E, 128)            # fold factor so f*E % 128 == 0
    fH, fE = f * H, f * E

    nr_raw = pl.cdiv(total, f)                              # folded rows needed
    blk = min(block_rows, _round_up(max(nr_raw, 8), 8))     # big block, mult of 8
    blk = _round_up(blk, 8)
    nr = _round_up(nr_raw, blk)                             # padded folded rows
    grid = nr // blk

    tt_flat = tt.reshape(-1).astype(jnp.float32)
    tt_flat = jnp.pad(tt_flat, (0, nr * f - total))
    tt_folded = tt_flat.reshape(nr, f)                      # no transpose, pure view

    w1 = w_lin.reshape(1, H).astype(jnp.float32)
    eye_f = jnp.eye(f, dtype=jnp.float32)
    w_expand = jnp.kron(eye_f, w1)                          # (f, f*H)
    b_wide = jnp.tile(b_lin.astype(jnp.float32), f).reshape(1, fH)
    w_blk = jnp.kron(eye_f, w_out.T.astype(jnp.float32))    # (f*H, f*E) block-diag

    out = pl.pallas_call(
        note_tau_kernel,
        out_shape=jax.ShapeDtypeStruct((nr, fE), jnp.float32),
        grid_spec=pltpu.PrefetchScalarGridSpec(
            num_scalar_prefetch=0,
            grid=(grid,),
            in_specs=[
                pl.BlockSpec((blk, f), lambda i: (i, 0)),    # folded times
                pl.BlockSpec((f, fH), lambda i: (0, 0)),     # resident weights
                pl.BlockSpec((1, fH), lambda i: (0, 0)),
                pl.BlockSpec((fH, fE), lambda i: (0, 0)),
            ],
            out_specs=pl.BlockSpec((blk, fE), lambda i: (i, 0)),
        ),
        compiler_params=pltpu.CompilerParams(
            dimension_semantics=("parallel",)),
    )(tt_folded, w_expand, b_wide, w_blk)

    # (nr, f*E) row-major is exactly (nr*f, E); drop padding, restore (B, N, E).
    return out.reshape(nr * f, E)[:total].reshape(B, N, E)


if __name__ == "__main__":
    key = jax.random.PRNGKey(0)
    B, N = 2, 50                 # N chosen so the padding/tail path is exercised
    hid_dim, embed_time = 16, 32

    k1, k2, k3, k4 = jax.random.split(key, 4)
    # Deterministic synthetic parameters (shapes from FFNN/Note_Tau_Encoder __init__).
    w_lin = jax.random.uniform(k1, (hid_dim, 1), minval=-1.0, maxval=1.0, dtype=jnp.float32)
    b_lin = jax.random.uniform(k2, (hid_dim,), minval=-1.0, maxval=1.0, dtype=jnp.float32)
    bound = 1.0 / (hid_dim ** 0.5)
    w_out = jax.random.uniform(k3, (embed_time, hid_dim), minval=-bound, maxval=bound,
                               dtype=jnp.float32)
    tt = jax.random.uniform(k4, (B, N), minval=0.0, maxval=5.0, dtype=jnp.float32)

    out = note_tau_encoder_forward(tt, w_lin, b_lin, w_out)
    out = jax.block_until_ready(out)

    # Pure-JAX reference of the PyTorch forward.
    h_ref = jnp.tanh(tt[..., None] * w_lin[:, 0] + b_lin)       # (B, N, H)
    ref = jnp.einsum("bnh,eh->bne", h_ref, w_out)               # (B, N, E)

    assert out.shape == (B, N, embed_time)
    err = float(jnp.max(jnp.abs(out - ref)))
    assert jnp.allclose(out, ref, atol=1e-4, rtol=1e-4), f"max abs err {err}"
    print("KERNEL_OK")
</pallas_src>

<mosaic_0001>
module attributes {stable_mosaic.version = 11 : i64} {
  func.func @note_tau_kernel(%arg0: i32, %arg1: memref<32x4xf32, #tpu.memory_space<vmem>>, %arg2: memref<4x64xf32, #tpu.memory_space<vmem>>, %arg3: memref<1x64xf32, #tpu.memory_space<vmem>>, %arg4: memref<64x128xf32, #tpu.memory_space<vmem>>, %arg5: memref<32x128xf32, #tpu.memory_space<vmem>>) attributes {dimension_semantics = [#tpu.dimension_semantics<parallel>], iteration_bounds = array<i64: 1>, scalar_prefetch = 0 : i64, scratch_operands = 0 : i64, tpu.core_type = #tpu.core_type<tc>, window_params = [{transform_indices = @transform_0, window_bounds = array<i64: 32, 4>}, {pipeline_mode = #tpu.pipeline_mode<synchronous>, transform_indices = @transform_1, window_bounds = array<i64: 4, 64>}, {pipeline_mode = #tpu.pipeline_mode<synchronous>, transform_indices = @transform_2, window_bounds = array<i64: 1, 64>}, {pipeline_mode = #tpu.pipeline_mode<synchronous>, transform_indices = @transform_3, window_bounds = array<i64: 64, 128>}, {transform_indices = @transform_4, window_bounds = array<i64: 32, 128>}]} {
    %c0 = arith.constant 0 : index
    %c0_0 = arith.constant 0 : index
    %0 = vector.load %arg1[%c0, %c0_0] : memref<32x4xf32, #tpu.memory_space<vmem>>, vector<32x4xf32>
    %c0_1 = arith.constant 0 : index
    %c0_2 = arith.constant 0 : index
    %1 = vector.load %arg2[%c0_1, %c0_2] : memref<4x64xf32, #tpu.memory_space<vmem>>, vector<4x64xf32>
    %cst = arith.constant dense<0.000000e+00> : vector<32x64xf32>
    %2 = tpu.matmul %0, %1, %cst {dimension_numbers = #tpu.dot_dimension_numbers<[1], [0], [0], [1], [0, 0, 1, 1], [], []>} : vector<32x4xf32>, vector<4x64xf32>, vector<32x64xf32> -> vector<32x64xf32>
    %c0_3 = arith.constant 0 : index
    %c0_4 = arith.constant 0 : index
    %3 = vector.load %arg3[%c0_3, %c0_4] : memref<1x64xf32, #tpu.memory_space<vmem>>, vector<1x64xf32>
    %4 = vector.broadcast %3 : vector<1x64xf32> to vector<32x64xf32>
    %5 = arith.addf %2, %4 : vector<32x64xf32>
    %6 = math.tanh %5 : vector<32x64xf32>
    %c0_5 = arith.constant 0 : index
    %c0_6 = arith.constant 0 : index
    %7 = vector.load %arg4[%c0_5, %c0_6] : memref<64x128xf32, #tpu.memory_space<vmem>>, vector<64x128xf32>
    %cst_7 = arith.constant dense<0.000000e+00> : vector<32x128xf32>
    %8 = tpu.matmul %6, %7, %cst_7 {dimension_numbers = #tpu.dot_dimension_numbers<[1], [0], [0], [1], [0, 0, 1, 1], [], []>} : vector<32x64xf32>, vector<64x128xf32>, vector<32x128xf32> -> vector<32x128xf32>
    %c0_8 = arith.constant 0 : index
    %c0_9 = arith.constant 0 : index
    %9 = vector.load %arg5[%c0_8, %c0_9] : memref<32x128xf32, #tpu.memory_space<vmem>>, vector<32x128xf32>
    tpu.vector_store %arg5[%c0_8, %c0_9], %8 {strides = array<i32>} : memref<32x128xf32, #tpu.memory_space<vmem>>, vector<32x128xf32>,
    return
  }
  func.func @transform_0(%arg0: i32) -> (i32, i32) {
    %c0_i32 = arith.constant 0 : i32
    %c0_i32_0 = arith.constant 0 : i32
    return %arg0, %c0_i32 : i32, i32
  }
  func.func @transform_1(%arg0: i32) -> (i32, i32) {
    %c0_i32 = arith.constant 0 : i32
    %c0_i32_0 = arith.constant 0 : i32
    %c0_i32_1 = arith.constant 0 : i32
    return %c0_i32, %c0_i32_0 : i32, i32
  }
  func.func @transform_2(%arg0: i32) -> (i32, i32) {
    %c0_i32 = arith.constant 0 : i32
    %c0_i32_0 = arith.constant 0 : i32
    %c0_i32_1 = arith.constant 0 : i32
    return %c0_i32, %c0_i32_0 : i32, i32
  }
  func.func @transform_3(%arg0: i32) -> (i32, i32) {
    %c0_i32 = arith.constant 0 : i32
    %c0_i32_0 = arith.constant 0 : i32
    %c0_i32_1 = arith.constant 0 : i32
    return %c0_i32, %c0_i32_0 : i32, i32
  }
  func.func @transform_4(%arg0: i32) -> (i32, i32) {
    %c0_i32 = arith.constant 0 : i32
    %c0_i32_0 = arith.constant 0 : i32
    return %arg0, %c0_i32 : i32, i32
  }
}

</mosaic_0001>

<llo_original>
// kernel: tpu_custom_call.1
$region0: #{tpu_custom_call.1}
  #allocation0 [shape = 'u32[]', space=smem, size = 0x4, offset = 0x4, fixed_abs, tag = 'smem constant byte address 0x4 - core index']
  #allocation1 [shape = 'u32[72,128]{1,0:T(1,128)}', space=vmem, size = 0x9000, scoped, tag = 'internal scratch']
  %s0 = inlined_call_operand.vmem [shape: f32[32,4], index: 0, kind: input, shape index: {}]
  %s1 = inlined_call_operand.vmem [shape: f32[4,64], index: 1, kind: input, shape index: {}]
  %s2 = inlined_call_operand.vmem [shape: f32[1,64], index: 2, kind: input, shape index: {}]
  %s3 = inlined_call_operand.hbm [shape: f32[64,128], index: 3, kind: input, shape index: {}]
  %s4 = inlined_call_operand.hbm [shape: f32[32,128], index: 4, kind: output, shape index: {}]
  %s5 = sld [smem:[#allocation0]]
  $region30: #{tpu_custom_call.1} parent=0
    _
  %s7 = ssub.s32 1, %s5
  %s8 = scalar_select 0, %s7, %s5
  $region1: #{tpu_custom_call.1} parent=0
    #allocation2 [shape = 'u8[32768]{0}', space=vmem, size = 0x8000, scoped, tag = 'input window, operand 3, single buffered']
    #allocation3 [shape = 's32[1]{0}', space=sflag, size = 0x4, scoped, tag = 'scoped memory for tpu_custom_call.1']
    #allocation4 [shape = 's32[1]{0}', space=sflag, size = 0x4, scoped, tag = 'scoped memory for tpu_custom_call.1']
    #allocation5 [shape = 'u8[16384]{0}', space=vmem, size = 0x4000, scoped, tag = 'output window, operand 0, single buffered']
    %9 = vsyncpa [#allocation3], 0
    %10 = vsyncpa [#allocation4], 0
    // Predicated region
    $region2: #{tpu_custom_call.1} parent=1 // pred_check
      _
    $region3: #{tpu_custom_call.1} parent=1 // pred_check_branch
      %12 = sbr.rel (0) target = $region5
    $region4: #{tpu_custom_call.1} parent=1 // pred_region
      _
    $region5: #{tpu_custom_call.1} parent=1 // pred_fallthru
      _
    // Predicated region
    $region6: #{tpu_custom_call.1} parent=1 // pred_check
      _
    $region7: #{tpu_custom_call.1} parent=1 // pred_check_branch
      %14 = sbr.rel (0) target = $region9
    $region8: #{tpu_custom_call.1} parent=1 // pred_region
      _
    $region9: #{tpu_custom_call.1} parent=1 // pred_fallthru
      _
    // Predicated region
    $region10: #{tpu_custom_call.1} parent=1 // pred_check
      _
    $region11: #{tpu_custom_call.1} parent=1 // pred_check_branch
      %16 = sbr.rel (0) target = $region13
    $region12: #{tpu_custom_call.1} parent=1 // pred_region
      _
    $region13: #{tpu_custom_call.1} parent=1 // pred_fallthru
      _
    // Predicated region
    $region14: #{tpu_custom_call.1} parent=1 // pred_check
      _
    $region15: #{tpu_custom_call.1} parent=1 // pred_check_branch
      %18 = sbr.rel (0) target = $region17
    $region16: #{tpu_custom_call.1} parent=1 // pred_region
      %20 = vsyncadd [#allocation3], 0
      %s21 = sshll.u32 %s3, 4
      %s22 = int_to_ptr.hbm [resolvable:$true] %s21
      %s23 = sshll.u32 [#allocation2], 4
      %s24 = int_to_ptr.vmem [resolvable:$true] %s23
      %29 = dma.hbm_to_vmem [thread:$0]  %s22, 1024, %s24, [#allocation3], 128, 128, 8
    $region17: #{tpu_custom_call.1} parent=1 // pred_fallthru
      _
    // Predicated region
    $region18: #{tpu_custom_call.1} parent=1 // pred_check
      _
    $region19: #{tpu_custom_call.1} parent=1 // pred_check_branch
      %31 = sbr.rel (0) target = $region21
    $region20: #{tpu_custom_call.1} parent=1 // pred_region
      %33 = dma.done [#allocation3], 1024
    $region21: #{tpu_custom_call.1} parent=1 // pred_fallthru
      _
    %v34 = vld [vmem:[%s0] sm:$0xff]
    %v35 = vld [vmem:[%s0 + $0x8] sm:$0xff]
    %v36 = vld [vmem:[%s0 + $0x10] sm:$0xff]
    %v37 = vld [vmem:[%s0 + $0x18] sm:$0xff]
    %v38 = vld [vmem:[%s1] sm:$0xf]
    %v39 = vld [vmem:[%s2] sm:$0x1]
    %v41 = vperm.slane %v39, 0
    %vm43 = vcmask 31744
    %v45 = vsel %vm43, %v34, 0
    %v48 = vsel %vm43, %v35, 0
    %v51 = vsel %vm43, %v36, 0
    %v54 = vsel %vm43, %v37, 0
    %vm56 = vcmask 1043456
    %v58 = vsel %vm56, %v38, 0
    %60 = vmatpush.msra.mxu0 0.0
    %61 = vmatpush.msra.mxu0 0.0
    %62 = vmatpush.msra.mxu0 0.0
    %63 = vmatpush.msra.mxu0 0.0
    %64 = vmatpush.msra.mxu0 0.0
    %65 = vmatpush.msra.mxu0 0.0
    %66 = vmatpush.msra.mxu0 0.0
    %67 = vmatpush.msra.mxu0 0.0
    %68 = vmatpush.msra.mxu0 0.0
    %69 = vmatpush.msra.mxu0 0.0
    %70 = vmatpush.msra.mxu0 0.0
    %71 = vmatpush.msra.mxu0 0.0
    %72 = vmatpush.msra.mxu0 0.0
    %73 = vmatpush.msra.mxu0 0.0
    %74 = vmatpush.msra.mxu0 0.0
    %75 = vmatpush.msra.mxu0 %v58
    %76 = vmatmul.f32.gmra.mxu0 %v45
    %v77 = vpop.f32.mrf.mxu0
    %v78 = vadd.f32 %v41, %v77
    %79 = vmatmul.f32.gmra.mxu0 %v48
    %v80 = vpop.f32.mrf.mxu0
    %v81 = vadd.f32 %v41, %v80
    %82 = vmatmul.f32.gmra.mxu0 %v51
    %v83 = vpop.f32.mrf.mxu0
    %v84 = vadd.f32 %v41, %v83
    %85 = vmatmul.f32.gmra.mxu0 %v54
    %v86 = vpop.f32.mrf.mxu0
    %v87 = vadd.f32 %v41, %v86
    %88 = vdwg.mxu0
    %v89 = vtanh.pop %v78
    %v90 = vtanh.pop %v81
    %v91 = vtanh.pop %v84
    %v92 = vtanh.pop %v87
    %v93 = vld [vmem:[#allocation2] sm:$0xff]
    %v94 = vld [vmem:[#allocation2 + $0x8] sm:$0xff]
    %v95 = vld [vmem:[#allocation2 + $0x10] sm:$0xff]
    %v96 = vld [vmem:[#allocation2 + $0x18] sm:$0xff]
    %v97 = vld [vmem:[#allocation2 + $0x20] sm:$0xff]
    %v98 = vld [vmem:[#allocation2 + $0x28] sm:$0xff]
    %v99 = vld [vmem:[#allocation2 + $0x30] sm:$0xff]
    %v100 = vld [vmem:[#allocation2 + $0x38] sm:$0xff]
    %vm101 = vcmask 523264
    %v103 = vsel %vm101, %v89, 0
    %v106 = vsel %vm101, %v90, 0
    %v109 = vsel %vm101, %v91, 0
    %v112 = vsel %vm101, %v92, 0
    %114 = vmatpush.msra.mxu0 0.0
    %115 = vmatpush.msra.mxu0 0.0
    %116 = vmatpush.msra.mxu0 0.0
    %117 = vmatpush.msra.mxu0 0.0
    %118 = vmatpush.msra.mxu0 0.0
    %119 = vmatpush.msra.mxu0 0.0
    %120 = vmatpush.msra.mxu0 0.0
    %121 = vmatpush.msra.mxu0 0.0
    %122 = vmatpush.msra.mxu0 %v100
    %123 = vmatpush.msra.mxu0 %v99
    %124 = vmatpush.msra.mxu0 %v98
    %125 = vmatpush.msra.mxu0 %v97
    %126 = vmatpush.msra.mxu0 %v96
    %127 = vmatpush.msra.mxu0 %v95
    %128 = vmatpush.msra.mxu0 %v94
    %129 = vmatpush.msra.mxu0 %v93
    %130 = vmatmul.f32.gmra.mxu0 %v103
    %v131 = vpop.f32.mrf.mxu0
    %v132 = vadd.f32 0.0, %v131
    %133 = vmatmul.f32.gmra.mxu0 %v106
    %v134 = vpop.f32.mrf.mxu0
    %v135 = vadd.f32 0.0, %v134
    %136 = vmatmul.f32.gmra.mxu0 %v109
    %v137 = vpop.f32.mrf.mxu0
    %v138 = vadd.f32 0.0, %v137
    %139 = vmatmul.f32.gmra.mxu0 %v112
    %v140 = vpop.f32.mrf.mxu0
    %v141 = vadd.f32 0.0, %v140
    %142 = vdwg.mxu0
    %143 = vst [vmem:[#allocation5] sm:$0xff] %v132
    %144 = vst [vmem:[#allocation5 + $0x8] sm:$0xff] %v135
    %145 = vst [vmem:[#allocation5 + $0x10] sm:$0xff] %v138
    %146 = vst [vmem:[#allocation5 + $0x18] sm:$0xff] %v141
    // Predicated region
    $region22: #{tpu_custom_call.1} parent=1 // pred_check
      _
    $region23: #{tpu_custom_call.1} parent=1 // pred_check_branch
      %148 = sbr.rel (0) target = $region25
    $region24: #{tpu_custom_call.1} parent=1 // pred_region
      %150 = vsyncadd [#allocation4], 0
      %s151 = sshll.u32 [#allocation5], 4
      %s152 = int_to_ptr.vmem [resolvable:$true] %s151
      %s153 = sshll.u32 %s4, 4
      %s154 = int_to_ptr.hbm [resolvable:$true] %s153
      %159 = dma.vmem_to_hbm [thread:$0]  %s152, 512, %s154, [#allocation4], 128, 128, 8
    $region25: #{tpu_custom_call.1} parent=1 // pred_fallthru
      _
    // Predicated region
    $region26: #{tpu_custom_call.1} parent=1 // pred_check
      _
    $region27: #{tpu_custom_call.1} parent=1 // pred_check_branch
      %161 = sbr.rel (0) target = $region29
    $region28: #{tpu_custom_call.1} parent=1 // pred_region
      %163 = dma.done [#allocation4], 512
    $region29: #{tpu_custom_call.1} parent=1 // pred_fallthru
      _
    %164 = vsyncpa [#allocation3], 1
    %165 = vsyncpa [#allocation4], 1

</llo_original>
